<compile_context>
chip_gen: v6e
topology: v6e:2x2x1
jax: 0.10.0
libtpu: 0.0.40
codegen_flags: <defaults>
</compile_context>

<pallas_src>
import jax
import jax.numpy as jnp
from jax.experimental import pallas as pl
from jax.experimental.pallas import tpu as pltpu


def cnn_kernel(x_ref, w1_ref, b1_ref, w2_ref, b2_ref, out_ref):
    # x_ref:  (8, bb)   flattened 1x2x4 conv window on sublanes, batch on lanes
    # w1_ref: (8, 8)    conv weight (out_ch, flattened window)
    # b1_ref: (8, 1)    conv bias (broadcasts across lanes)
    # w2_ref: (8, 1)    linear weight as a column (broadcasts across lanes)
    # b2_ref: (1, 1)    linear bias
    # out_ref:(1, bb)   lane-dense output, batch on lanes
    x = x_ref[...]
    # "conv" == (8,8) @ (8,bb) matmul; batch-on-lanes keeps the MXU N dim
    # (= batch tile) lane-dense instead of N=8.
    h = jnp.dot(w1_ref[...], x, preferred_element_type=jnp.float32) + b1_ref[...]
    h = jax.nn.sigmoid(h)  # EUP transcendental -> separate bundle slot
    # 8 -> 1 projection: VPU broadcast-multiply + sublane reduce (XLU),
    # avoiding a second degenerate MXU pass.
    out = jnp.sum(h * w2_ref[...], axis=0, keepdims=True) + b2_ref[...]
    out_ref[...] = out.astype(out_ref.dtype)


_LANE = 128        # lane width: batch tiles are multiples of this
_MAX_BB = 8192     # cap: (8, 8192) f32 in-block = 256 KiB; x2 buffers + out << VMEM


def _tiling(batch):
    """Return (padded_batch, batch_tile): lane-aligned, evenly dividing grid."""
    b_pad = ((batch + _LANE - 1) // _LANE) * _LANE
    bb = min(b_pad, _MAX_BB)
    b_pad = ((b_pad + bb - 1) // bb) * bb
    return b_pad, bb


@jax.jit
def cnn_forward(x, conv_w, conv_b, ff_w, ff_b):
    """x: (B, 1, 2, 4) NCHW; returns (B, 1) matching PyTorch cnn.forward."""
    B = x.shape[0]
    b_pad, bb = _tiling(B)

    # Layout glue (fused by XLA under jit): flatten the single 1x2x4 receptive
    # field, pad batch to a lane multiple, put batch on lanes.
    x_flat = x.reshape(B, 8).astype(jnp.float32)
    if b_pad != B:
        x_flat = jnp.pad(x_flat, ((0, b_pad - B), (0, 0)))
    x_t = x_flat.T                                      # (8, b_pad)

    w1 = conv_w.reshape(8, 8).astype(jnp.float32)       # (8, 8)
    b1 = conv_b.reshape(8, 1).astype(jnp.float32)       # (8, 1)
    w2 = ff_w.reshape(8, 1).astype(jnp.float32)         # (8, 1)  (ff_w is (1, 8))
    b2 = ff_b.reshape(1, 1).astype(jnp.float32)         # (1, 1)

    grid = (b_pad // bb,)

    out_t = pl.pallas_call(
        cnn_kernel,
        out_shape=jax.ShapeDtypeStruct((1, b_pad), jnp.float32),
        grid_spec=pltpu.PrefetchScalarGridSpec(
            num_scalar_prefetch=0,
            grid=grid,
            in_specs=[
                # batch tile marches across the grid (double-buffered DMA)
                pl.BlockSpec((8, bb), lambda i: (0, i)),
                # weights / biases: constant block index -> resident in VMEM
                pl.BlockSpec((8, 8), lambda i: (0, 0)),
                pl.BlockSpec((8, 1), lambda i: (0, 0)),
                pl.BlockSpec((8, 1), lambda i: (0, 0)),
                pl.BlockSpec((1, 1), lambda i: (0, 0)),
            ],
            out_specs=pl.BlockSpec((1, bb), lambda i: (0, i)),
        ),
        compiler_params=pltpu.CompilerParams(
            # batch axis is embarrassingly parallel -> shard across TCs (v7x)
            dimension_semantics=("parallel",),
        ),
    )(x_t, w1, b1, w2, b2)

    # Glue: drop batch padding, back to the PyTorch (B, 1) layout.
    return out_t[:, :B].T


if __name__ == "__main__":
    key = jax.random.PRNGKey(0)
    k_x, k_cw, k_cb, k_fw, k_fb = jax.random.split(key, 5)

    # NOTE: at B=2 this is launch-overhead-bound; the layout/grid choices above
    # pay off once B reaches the hundreds+ (batch on lanes, 128-multiple tiles).
    B = 2
    # Conv2d(1, 8, (2, 4)) followed by .view(B, 8) requires spatial output 1x1,
    # so the input must be (B, 1, 2, 4).
    x = jax.random.normal(k_x, (B, 1, 2, 4), dtype=jnp.float32)

    # Deterministic synthetic parameters (shapes match nn.Conv2d / nn.Linear).
    conv_w = jax.random.normal(k_cw, (8, 1, 2, 4), dtype=jnp.float32) * 0.1
    conv_b = jax.random.normal(k_cb, (8,), dtype=jnp.float32) * 0.1
    ff_w = jax.random.normal(k_fw, (1, 8), dtype=jnp.float32) * 0.1
    ff_b = jax.random.normal(k_fb, (1,), dtype=jnp.float32) * 0.1

    out = cnn_forward(x, conv_w, conv_b, ff_w, ff_b)
    out = jax.block_until_ready(out)

    # Pure-JAX reference of the same math (PyTorch semantics).
    ref_h = jax.nn.sigmoid(x.reshape(B, 8) @ conv_w.reshape(8, 8).T + conv_b)
    ref = ref_h @ ff_w.T + ff_b
    assert out.shape == (B, 1)
    assert jnp.allclose(out, ref, atol=1e-5), "mismatch vs reference"

    print("KERNEL_OK")
</pallas_src>

<mosaic_0001>
module attributes {stable_mosaic.version = 11 : i64} {
  func.func @cnn_kernel(%arg0: i32, %arg1: memref<8x128xf32, #tpu.memory_space<vmem>>, %arg2: memref<8x8xf32, #tpu.memory_space<vmem>>, %arg3: memref<8x1xf32, #tpu.memory_space<vmem>>, %arg4: memref<8x1xf32, #tpu.memory_space<vmem>>, %arg5: memref<1x1xf32, #tpu.memory_space<vmem>>, %arg6: memref<1x128xf32, #tpu.memory_space<vmem>>) attributes {dimension_semantics = [#tpu.dimension_semantics<parallel>], iteration_bounds = array<i64: 1>, scalar_prefetch = 0 : i64, scratch_operands = 0 : i64, tpu.core_type = #tpu.core_type<tc>, window_params = [{transform_indices = @transform_0, window_bounds = array<i64: 8, 128>}, {pipeline_mode = #tpu.pipeline_mode<synchronous>, transform_indices = @transform_1, window_bounds = array<i64: 8, 8>}, {pipeline_mode = #tpu.pipeline_mode<synchronous>, transform_indices = @transform_2, window_bounds = array<i64: 8, 1>}, {pipeline_mode = #tpu.pipeline_mode<synchronous>, transform_indices = @transform_3, window_bounds = array<i64: 8, 1>}, {pipeline_mode = #tpu.pipeline_mode<synchronous>, transform_indices = @transform_4, window_bounds = array<i64: 1, 1>}, {transform_indices = @transform_5, window_bounds = array<i64: 1, 128>}]} {
    %c0 = arith.constant 0 : index
    %c0_0 = arith.constant 0 : index
    %0 = vector.load %arg1[%c0, %c0_0] : memref<8x128xf32, #tpu.memory_space<vmem>>, vector<8x128xf32>
    %c0_1 = arith.constant 0 : index
    %c0_2 = arith.constant 0 : index
    %1 = vector.load %arg2[%c0_1, %c0_2] : memref<8x8xf32, #tpu.memory_space<vmem>>, vector<8x8xf32>
    %cst = arith.constant dense<0.000000e+00> : vector<8x128xf32>
    %2 = tpu.matmul %1, %0, %cst {dimension_numbers = #tpu.dot_dimension_numbers<[1], [0], [0], [1], [0, 0, 1, 1], [], []>} : vector<8x8xf32>, vector<8x128xf32>, vector<8x128xf32> -> vector<8x128xf32>
    %c0_3 = arith.constant 0 : index
    %c0_4 = arith.constant 0 : index
    %3 = vector.load %arg3[%c0_3, %c0_4] : memref<8x1xf32, #tpu.memory_space<vmem>>, vector<8x1xf32>
    %4 = vector.broadcast %3 : vector<8x1xf32> to vector<8x128xf32>
    %5 = arith.addf %2, %4 : vector<8x128xf32>
    %6 = arith.negf %5 : vector<8x128xf32>
    %7 = math.exp %6 : vector<8x128xf32>
    %cst_5 = arith.constant 1.000000e+00 : f32
    %8 = vector.broadcast %cst_5 : f32 to vector<8x128xf32>
    %9 = arith.addf %8, %7 : vector<8x128xf32>
    %10 = arith.divf %8, %9 : vector<8x128xf32>
    %c0_6 = arith.constant 0 : index
    %c0_7 = arith.constant 0 : index
    %11 = vector.load %arg4[%c0_6, %c0_7] : memref<8x1xf32, #tpu.memory_space<vmem>>, vector<8x1xf32>
    %12 = vector.broadcast %11 : vector<8x1xf32> to vector<8x128xf32>
    %13 = arith.mulf %10, %12 : vector<8x128xf32>
    %cst_8 = arith.constant dense<0.000000e+00> : vector<128xf32>
    %14 = vector.multi_reduction <add>, %13, %cst_8 [0] : vector<8x128xf32> to vector<128xf32>
    %15 = vector.shape_cast %14 : vector<128xf32> to vector<1x128xf32>
    %c0_9 = arith.constant 0 : index
    %c0_10 = arith.constant 0 : index
    %16 = vector.load %arg5[%c0_9, %c0_10] : memref<1x1xf32, #tpu.memory_space<vmem>>, vector<1x1xf32>
    %17 = vector.broadcast %16 : vector<1x1xf32> to vector<1x128xf32>
    %18 = arith.addf %15, %17 : vector<1x128xf32>
    %c0_11 = arith.constant 0 : index
    %c0_12 = arith.constant 0 : index
    %19 = vector.load %arg6[%c0_11, %c0_12] : memref<1x128xf32, #tpu.memory_space<vmem>>, vector<1x128xf32>
    tpu.vector_store %arg6[%c0_11, %c0_12], %18 {strides = array<i32>} : memref<1x128xf32, #tpu.memory_space<vmem>>, vector<1x128xf32>,
    return
  }
  func.func @transform_0(%arg0: i32) -> (i32, i32) {
    %c0_i32 = arith.constant 0 : i32
    %c0_i32_0 = arith.constant 0 : i32
    return %c0_i32, %arg0 : i32, i32
  }
  func.func @transform_1(%arg0: i32) -> (i32, i32) {
    %c0_i32 = arith.constant 0 : i32
    %c0_i32_0 = arith.constant 0 : i32
    %c0_i32_1 = arith.constant 0 : i32
    return %c0_i32, %c0_i32_0 : i32, i32
  }
  func.func @transform_2(%arg0: i32) -> (i32, i32) {
    %c0_i32 = arith.constant 0 : i32
    %c0_i32_0 = arith.constant 0 : i32
    %c0_i32_1 = arith.constant 0 : i32
    return %c0_i32, %c0_i32_0 : i32, i32
  }
  func.func @transform_3(%arg0: i32) -> (i32, i32) {
    %c0_i32 = arith.constant 0 : i32
    %c0_i32_0 = arith.constant 0 : i32
    %c0_i32_1 = arith.constant 0 : i32
    return %c0_i32, %c0_i32_0 : i32, i32
  }
  func.func @transform_4(%arg0: i32) -> (i32, i32) {
    %c0_i32 = arith.constant 0 : i32
    %c0_i32_0 = arith.constant 0 : i32
    %c0_i32_1 = arith.constant 0 : i32
    return %c0_i32, %c0_i32_0 : i32, i32
  }
  func.func @transform_5(%arg0: i32) -> (i32, i32) {
    %c0_i32 = arith.constant 0 : i32
    %c0_i32_0 = arith.constant 0 : i32
    return %c0_i32, %arg0 : i32, i32
  }
}

</mosaic_0001>

<llo_original>
// kernel: cnn_forward.1
$region0: #{cnn_forward.1}
  #allocation0 [shape = 'u32[]', space=smem, size = 0x4, offset = 0x4, fixed_abs, tag = 'smem constant byte address 0x4 - core index']
  #allocation1 [shape = 'u32[144,128]{1,0:T(1,128)}', space=vmem, size = 0x12000, scoped, tag = 'internal scratch']
  #allocation2 [shape = 'f32[1,1]{1,0:T(1,128)S(1)}', space=vmem, size = 0x200, scoped, tag = 'scoped memory for cnn_forward.1']
  %s0 = inlined_call_operand.vmem [shape: f32[8,128], index: 0, kind: input, shape index: {}]
  %s1 = inlined_call_operand.vmem [shape: f32[8,8], index: 1, kind: input, shape index: {}]
  %s2 = inlined_call_operand.vmem [shape: f32[8,1], index: 2, kind: input, shape index: {}]
  %s3 = inlined_call_operand.vmem [shape: f32[8,1], index: 3, kind: input, shape index: {}]
  %s4 = inlined_call_operand.<no memory space> [shape: f32[1,1], index: 4, kind: input, shape index: {}]
  %s5 = inlined_call_operand.vmem [shape: f32[1,128], index: 5, kind: output, shape index: {}]
  %s6 = sld [smem:[#allocation0]]
  $region30: #{cnn_forward.1} parent=0
    _
  %s8 = ssub.s32 1, %s6
  %s9 = scalar_select 0, %s8, %s6
  %v10 = vstv %s4
  %11 = vst [vmem:[#allocation2] sm:$0x1] %v10
  // Predicated region
  $region2: #{cnn_forward.1} parent=0 // pred_check
    _
  $region3: #{cnn_forward.1} parent=0 // pred_check_branch
    %13 = sbr.rel (0) target = $region5
  $region4: #{cnn_forward.1} parent=0 // pred_region
    _
  $region5: #{cnn_forward.1} parent=0 // pred_fallthru
    _
  // Predicated region
  $region6: #{cnn_forward.1} parent=0 // pred_check
    _
  $region7: #{cnn_forward.1} parent=0 // pred_check_branch
    %15 = sbr.rel (0) target = $region9
  $region8: #{cnn_forward.1} parent=0 // pred_region
    _
  $region9: #{cnn_forward.1} parent=0 // pred_fallthru
    _
  // Predicated region
  $region10: #{cnn_forward.1} parent=0 // pred_check
    _
  $region11: #{cnn_forward.1} parent=0 // pred_check_branch
    %17 = sbr.rel (0) target = $region13
  $region12: #{cnn_forward.1} parent=0 // pred_region
    _
  $region13: #{cnn_forward.1} parent=0 // pred_fallthru
    _
  // Predicated region
  $region14: #{cnn_forward.1} parent=0 // pred_check
    _
  $region15: #{cnn_forward.1} parent=0 // pred_check_branch
    %19 = sbr.rel (0) target = $region17
  $region16: #{cnn_forward.1} parent=0 // pred_region
    _
  $region17: #{cnn_forward.1} parent=0 // pred_fallthru
    _
  // Predicated region
  $region18: #{cnn_forward.1} parent=0 // pred_check
    _
  $region19: #{cnn_forward.1} parent=0 // pred_check_branch
    %21 = sbr.rel (0) target = $region21
  $region20: #{cnn_forward.1} parent=0 // pred_region
    _
  $region21: #{cnn_forward.1} parent=0 // pred_fallthru
    _
  %v22 = vld [vmem:[%s0] sm:$0xff]
  %v23 = vld [vmem:[%s1] sm:$0xff]
  %v24 = vld [vmem:[%s2] sm:$0xff]
  %26 = vset.pattern.permute.xlu0 0
  %27 = vperm.xlu0 %26, %v24
  %v28 = vpop.permute.xlu0 %27
  %vm30 = vcmask 64512
  %v32 = vsel %vm30, %v23, 0
  %34 = vmatprep.subr.mxu0 0.0
  %35 = vmatpush1.msra.mxu0 0.0
  %36 = vmatprep.subr.mxu0 0.0
  %37 = vmatpush1.msra.mxu0 0.0
  %38 = vmatprep.subr.mxu0 0.0
  %39 = vmatpush1.msra.mxu0 0.0
  %40 = vmatprep.subr.mxu0 0.0
  %41 = vmatpush1.msra.mxu0 0.0
  %42 = vmatprep.subr.mxu0 0.0
  %43 = vmatpush1.msra.mxu0 0.0
  %44 = vmatprep.subr.mxu0 0.0
  %45 = vmatpush1.msra.mxu0 0.0
  %46 = vmatprep.subr.mxu0 0.0
  %47 = vmatpush1.msra.mxu0 0.0
  %48 = vmatprep.subr.mxu0 0.0
  %49 = vmatpush1.msra.mxu0 0.0
  %50 = vmatprep.subr.mxu0 0.0
  %51 = vmatpush1.msra.mxu0 0.0
  %52 = vmatprep.subr.mxu0 0.0
  %53 = vmatpush1.msra.mxu0 0.0
  %54 = vmatprep.subr.mxu0 0.0
  %55 = vmatpush1.msra.mxu0 0.0
  %56 = vmatprep.subr.mxu0 0.0
  %57 = vmatpush1.msra.mxu0 0.0
  %58 = vmatprep.subr.mxu0 0.0
  %59 = vmatpush1.msra.mxu0 0.0
  %60 = vmatprep.subr.mxu0 0.0
  %61 = vmatpush1.msra.mxu0 0.0
  %62 = vmatprep.subr.mxu0 0.0
  %63 = vmatpush1.msra.mxu0 0.0
  %64 = vmatprep.subr.mxu0 0.0
  %65 = vmatpush1.msra.mxu0 %v22
  %66 = vmatprep.subr.mxu0 0.0
  %67 = vmatpush2.msra.mxu0 0.0
  %68 = vmatprep.subr.mxu0 0.0
  %69 = vmatpush2.msra.mxu0 0.0
  %70 = vmatprep.subr.mxu0 0.0
  %71 = vmatpush2.msra.mxu0 0.0
  %72 = vmatprep.subr.mxu0 0.0
  %73 = vmatpush2.msra.mxu0 0.0
  %74 = vmatprep.subr.mxu0 0.0
  %75 = vmatpush2.msra.mxu0 0.0
  %76 = vmatprep.subr.mxu0 0.0
  %77 = vmatpush2.msra.mxu0 0.0
  %78 = vmatprep.subr.mxu0 0.0
  %79 = vmatpush2.msra.mxu0 0.0
  %80 = vmatprep.subr.mxu0 0.0
  %81 = vmatpush2.msra.mxu0 0.0
  %82 = vmatprep.subr.mxu0 0.0
  %83 = vmatpush2.msra.mxu0 0.0
  %84 = vmatprep.subr.mxu0 0.0
  %85 = vmatpush2.msra.mxu0 0.0
  %86 = vmatprep.subr.mxu0 0.0
  %87 = vmatpush2.msra.mxu0 0.0
  %88 = vmatprep.subr.mxu0 0.0
  %89 = vmatpush2.msra.mxu0 0.0
  %90 = vmatprep.subr.mxu0 0.0
  %91 = vmatpush2.msra.mxu0 0.0
  %92 = vmatprep.subr.mxu0 0.0
  %93 = vmatpush2.msra.mxu0 0.0
  %94 = vmatprep.subr.mxu0 0.0
  %95 = vmatpush2.msra.mxu0 0.0
  %96 = vmatprep.subr.mxu0 0.0
  %97 = vmatpush2.msra.mxu0 0.0
  %98 = vmatprep.mubr.f32.mxu0 0.0
  %99 = vmatmul.mubr.f32.gmra.mxu0 %v32
  %v100 = vpop.f32.mrf.mxu0
  %v101 = vadd.f32 %v28, %v100
  %v102 = vpop.f32.mrf.mxu0
  %103 = vdwg.mxu0
  %v104 = vxor.u32 %v101, 2147483648
  %v105 = vmul.f32 %v104, 1.442695
  %v106 = vpow.pop %v105
  %v107 = vadd.f32 %v106, 1.0
  %v108 = vrcp.pop %v107
  %v109 = vmul.f32 1.0, %v108
  %v110 = vld [vmem:[%s3] sm:$0xff]
  %112 = vset.pattern.permute.xlu0 0
  %113 = vperm.xlu0 %112, %v110
  %v114 = vpop.permute.xlu0 %113
  %v116 = vmul.f32 %v109, %v114
  %v117 = vrot.slane %v116, 4
  %v118 = vadd.f32 %v116, %v117
  %v119 = vrot.slane %v118, 2
  %v120 = vadd.f32 %v118, %v119
  %v121 = vrot.slane %v120, 1
  %v122 = vadd.f32 %v120, %v121
  %v123 = vld [vmem:[#allocation2] sm:$0x1]
  %125 = vset.pattern.permute.xlu0 0
  %126 = vperm.xlu0 %125, %v123
  %v127 = vpop.permute.xlu0 %126
  %v129 = vlaneseq
  %v130 = vshrl.u32 %v129, 7
  %v131 = vsub.s32 0, %v130
  %v132 = vrot.slane %v127, %v131
  %v133 = vadd.f32 %v122, %v132
  %134 = vst [vmem:[%s5] sm:$0x1] %v133
  // Predicated region
  $region22: #{cnn_forward.1} parent=0 // pred_check
    _
  $region23: #{cnn_forward.1} parent=0 // pred_check_branch
    %136 = sbr.rel (0) target = $region25
  $region24: #{cnn_forward.1} parent=0 // pred_region
    _
  $region25: #{cnn_forward.1} parent=0 // pred_fallthru
    _
  // Predicated region
  $region26: #{cnn_forward.1} parent=0 // pred_check
    _
  $region27: #{cnn_forward.1} parent=0 // pred_check_branch
    %138 = sbr.rel (0) target = $region29
  $region28: #{cnn_forward.1} parent=0 // pred_region
    _
  $region29: #{cnn_forward.1} parent=0 // pred_fallthru
    _

</llo_original>
